<compile_context>
chip_gen: v7x
topology: tpu7x:2x2x1
jax: 0.10.0
libtpu: 0.0.40
codegen_flags: <defaults>
</compile_context>

<pallas_src>
import functools
import math

import jax
import jax.numpy as jnp
from jax.experimental import pallas as pl
from jax.experimental.pallas import tpu as pltpu


def _round_up(x, m):
    return ((x + m - 1) // m) * m


def _pick_block(target, total):
    """Largest multiple of 128 that is <= target and divides total."""
    t = min(target, total)
    t = (t // 128) * 128
    while t > 128 and total % t != 0:
        t -= 128
    return max(t, 128)


def _gat_kernel(alpha, s_src_ref, s_dst_ref, bias_ref, wh_ref, out_ref,
                m_sc, l_sc, acc_sc):
    """One (row-block, col-block) step of softmax(leaky(s_i+s_j)+bias) @ Wh.

    Online (flash-style) softmax over the column axis; out_ref is resident
    across the column axis (same output block index for every j).
    """
    j = pl.program_id(1)

    @pl.when(j == 0)
    def _():
        m_sc[...] = jnp.full_like(m_sc, -jnp.inf)
        l_sc[...] = jnp.zeros_like(l_sc)
        acc_sc[...] = jnp.zeros_like(acc_sc)

    # Dense logit block from hoisted per-node scores: [TM,1] + [1,TN].
    logits = s_src_ref[...] + s_dst_ref[...]                    # [TM, TN]
    leaky = jnp.maximum(logits, alpha * logits)                 # LeakyReLU (1 VPU op)
    # Additive adjacency bias: 0 edge / -9e15 non-edge / -inf padded column.
    att = leaky + bias_ref[...].astype(jnp.float32)             # [TM, TN]

    # Online softmax update.  Every column block contains at least one
    # non-(-inf) column (padding < 128 <= TN), so m_new is always finite.
    m_prev = m_sc[...]
    m_new = jnp.maximum(m_prev, jnp.max(att, axis=1, keepdims=True))
    corr = jnp.exp(m_prev - m_new)              # j == 0: exp(-inf) = 0
    p = jnp.exp(att - m_new)                    # -inf (padded cols) -> 0

    l_sc[...] = corr * l_sc[...] + jnp.sum(p, axis=1, keepdims=True)
    acc_sc[...] = corr * acc_sc[...] + jnp.dot(
        p.astype(jnp.bfloat16), wh_ref[...],
        preferred_element_type=jnp.float32)     # bf16 x bf16 MXU, f32 acc
    m_sc[...] = m_new

    @pl.when(j == pl.num_programs(1) - 1)
    def _():
        out_ref[...] = (acc_sc[...] *
                        pl.reciprocal(l_sc[...], approx=True)).astype(out_ref.dtype)


def gat_forward(X, W, a, edges, alpha, *, block_rows=256, block_cols=512):
    """Pallas forward for GraphAttentionLayer (eval mode)."""
    n, f_in = X.shape
    f_out = W.shape[1]
    assert a.shape == (2 * f_out, 1)

    n_pad = _round_up(n, 128)
    f_out_pad = _round_up(f_out, 128)
    tm = _pick_block(block_rows, n_pad)
    tn = _pick_block(block_cols, n_pad)

    xf = X.astype(jnp.float32)
    wf = W.astype(jnp.float32)
    af = a.astype(jnp.float32)

    # --- Hoisted projections (computed once, wrapper-side, with XLA). ---
    wh = xf @ wf                                   # [N, F_out]
    s_src = wh @ af[:f_out]                        # [N, 1]
    s_dst = (wh @ af[f_out:]).T                    # [1, N]  (lane-dense)

    wh_p = jnp.zeros((n_pad, f_out_pad), jnp.bfloat16).at[:n, :f_out].set(
        wh.astype(jnp.bfloat16))
    s_src_p = jnp.zeros((n_pad, 1), jnp.float32).at[:n, :].set(s_src)
    s_dst_p = jnp.zeros((1, n_pad), jnp.float32).at[:, :n].set(s_dst)

    # --- Additive adjacency bias (bf16): 0 edge, -9e15 non-edge (torch fill),
    # -inf reserved strictly for padded columns (excluded from the softmax). ---
    src = edges[0].astype(jnp.int32)
    tgt = edges[1].astype(jnp.int32)
    bias = jnp.full((n_pad, n_pad), jnp.float32(-9e15))
    bias = bias.at[src, tgt].set(0.0, mode="drop")
    col = jnp.arange(n_pad)[None, :]
    bias = jnp.where(col < n, bias, -jnp.inf).astype(jnp.bfloat16)

    kernel = functools.partial(_gat_kernel, float(alpha))

    cost = pl.CostEstimate(
        flops=int(2 * n_pad * n_pad * f_out_pad + 8 * n_pad * n_pad),
        transcendentals=int(n_pad * n_pad + n_pad),
        bytes_accessed=int(n_pad * n_pad * 2                        # bias (bf16)
                           + (n_pad // tm) * n_pad * f_out_pad * 2  # Wh re-reads
                           + n_pad * f_out_pad * 4                  # output
                           + n_pad * 8))                            # s_src / s_dst

    out = pl.pallas_call(
        kernel,
        out_shape=jax.ShapeDtypeStruct((n_pad, f_out_pad), jnp.float32),
        grid_spec=pltpu.PrefetchScalarGridSpec(
            num_scalar_prefetch=0,
            grid=(n_pad // tm, n_pad // tn),
            in_specs=[
                pl.BlockSpec((tm, 1), lambda i, j: (i, 0)),          # s_src rows
                pl.BlockSpec((1, tn), lambda i, j: (0, j)),          # s_dst cols
                pl.BlockSpec((tm, tn), lambda i, j: (i, j)),         # bias tile
                pl.BlockSpec((tn, f_out_pad), lambda i, j: (j, 0)),  # Wh col-block
            ],
            out_specs=pl.BlockSpec((tm, f_out_pad), lambda i, j: (i, 0)),
            scratch_shapes=[
                pltpu.VMEM((tm, 1), jnp.float32),          # running max m
                pltpu.VMEM((tm, 1), jnp.float32),          # running denom l
                pltpu.VMEM((tm, f_out_pad), jnp.float32),  # output accumulator
            ]),
        compiler_params=pltpu.CompilerParams(
            dimension_semantics=("parallel", "arbitrary"),
            vmem_limit_bytes=64 * 1024 * 1024),
        cost_estimate=cost,
    )(s_src_p, s_dst_p, bias, wh_p)

    return out[:n, :f_out]


def _reference(X, W, a, edges, alpha):
    """Pure-JAX replica of the PyTorch forward (eval mode)."""
    n = X.shape[0]
    wh = X @ W
    src, tgt = edges[0], edges[1]
    e = jnp.concatenate([wh[src], wh[tgt]], axis=1) @ a          # [E, 1]
    e = jnp.where(e > 0, e, alpha * e)                           # LeakyReLU
    att = jnp.full((n, n), -9e15, jnp.float32).at[src, tgt].set(e[:, 0])
    att = jax.nn.softmax(att, axis=1)
    return att @ wh


def _xavier_uniform(key, shape, gain):
    fan_in, fan_out = shape[0], shape[1]
    bound = gain * math.sqrt(6.0 / (fan_in + fan_out))
    return jax.random.uniform(key, shape, jnp.float32, -bound, bound)


if __name__ == "__main__":
    # Small, deterministic, lane-friendly problem.
    N = 128        # number of nodes
    F_IN = 64      # input_dim
    F_OUT = 128    # output_dim
    E = 512        # number of edges
    ALPHA = 0.2    # LeakyReLU negative slope
    DROPOUT = 0.5  # eval mode -> identity

    key = jax.random.PRNGKey(0)
    kx, kw, ka, ks, kt = jax.random.split(key, 5)

    X = jax.random.normal(kx, (N, F_IN), jnp.float32)
    W = _xavier_uniform(kw, (F_IN, F_OUT), gain=1.414)
    a = _xavier_uniform(ka, (2 * F_OUT, 1), gain=1.414)
    bias = jnp.zeros((F_OUT,), jnp.float32)  # declared in __init__, unused in forward

    src = jax.random.randint(ks, (E,), 0, N, jnp.int32)
    tgt = jax.random.randint(kt, (E,), 0, N, jnp.int32)
    edges = jnp.stack([src, tgt], axis=0)    # [2, E]

    h_prime = gat_forward(X, W, a, edges, ALPHA)
    jax.block_until_ready(h_prime)

    ref = _reference(X, W, a, edges, ALPHA)
    rel_err = float(jnp.max(jnp.abs(h_prime - ref)) /
                    (jnp.max(jnp.abs(ref)) + 1e-6))

    assert h_prime.shape == (N, F_OUT)
    assert bool(jnp.all(jnp.isfinite(h_prime)))
    assert rel_err < 2e-2, f"max relative error {rel_err}"
    print("KERNEL_OK")
</pallas_src>

<mosaic_0001>
module attributes {stable_mosaic.version = 11 : i64} {
  func.func @_gat_kernel(%arg0: i32, %arg1: i32, %arg2: memref<128x1xf32, #tpu.memory_space<vmem>>, %arg3: memref<1x128xf32, #tpu.memory_space<vmem>>, %arg4: memref<128x128xbf16, #tpu.memory_space<vmem>>, %arg5: memref<128x128xbf16, #tpu.memory_space<vmem>>, %arg6: memref<128x128xf32, #tpu.memory_space<vmem>>, %arg7: memref<128x1xf32, #tpu.memory_space<vmem>>, %arg8: memref<128x1xf32, #tpu.memory_space<vmem>>, %arg9: memref<128x128xf32, #tpu.memory_space<vmem>>) attributes {dimension_semantics = [#tpu.dimension_semantics<parallel>, #tpu.dimension_semantics<arbitrary>], iteration_bounds = array<i64: 1, 1>, scalar_prefetch = 0 : i64, scratch_operands = 3 : i64, tpu.core_type = #tpu.core_type<tc>, window_params = [{transform_indices = @transform_0, window_bounds = array<i64: 128, 1>}, {transform_indices = @transform_1, window_bounds = array<i64: 1, 128>}, {transform_indices = @transform_2, window_bounds = array<i64: 128, 128>}, {transform_indices = @transform_3, window_bounds = array<i64: 128, 128>}, {transform_indices = @transform_4, window_bounds = array<i64: 128, 128>}]} {
    %c0_i32 = arith.constant 0 : i32
    %0 = arith.cmpi eq, %arg1, %c0_i32 : i32
    %1 = arith.extui %0 : i1 to i32
    %c0_i32_0 = arith.constant 0 : i32
    %2 = arith.cmpi ne, %1, %c0_i32_0 : i32
    scf.if %2 {
      %cst_25 = arith.constant 0xFF800000 : f32
      %41 = vector.broadcast %cst_25 : f32 to vector<128x1xf32>
      %c0_26 = arith.constant 0 : index
      %c0_27 = arith.constant 0 : index
      %42 = vector.load %arg7[%c0_26, %c0_27] : memref<128x1xf32, #tpu.memory_space<vmem>>, vector<128x1xf32>
      tpu.vector_store %arg7[%c0_26, %c0_27], %41 {strides = array<i32>} : memref<128x1xf32, #tpu.memory_space<vmem>>, vector<128x1xf32>,
      %cst_28 = arith.constant 0.000000e+00 : f32
      %43 = vector.broadcast %cst_28 : f32 to vector<128x1xf32>
      %c0_29 = arith.constant 0 : index
      %c0_30 = arith.constant 0 : index
      %44 = vector.load %arg8[%c0_29, %c0_30] : memref<128x1xf32, #tpu.memory_space<vmem>>, vector<128x1xf32>
      tpu.vector_store %arg8[%c0_29, %c0_30], %43 {strides = array<i32>} : memref<128x1xf32, #tpu.memory_space<vmem>>, vector<128x1xf32>,
      %cst_31 = arith.constant 0.000000e+00 : f32
      %45 = vector.broadcast %cst_31 : f32 to vector<128x128xf32>
      %c0_32 = arith.constant 0 : index
      %c0_33 = arith.constant 0 : index
      %46 = vector.load %arg9[%c0_32, %c0_33] : memref<128x128xf32, #tpu.memory_space<vmem>>, vector<128x128xf32>
      tpu.vector_store %arg9[%c0_32, %c0_33], %45 {strides = array<i32>} : memref<128x128xf32, #tpu.memory_space<vmem>>, vector<128x128xf32>,
    } else {
    }
    %c0 = arith.constant 0 : index
    %c0_1 = arith.constant 0 : index
    %3 = vector.load %arg2[%c0, %c0_1] : memref<128x1xf32, #tpu.memory_space<vmem>>, vector<128x1xf32>
    %c0_2 = arith.constant 0 : index
    %c0_3 = arith.constant 0 : index
    %4 = vector.load %arg3[%c0_2, %c0_3] : memref<1x128xf32, #tpu.memory_space<vmem>>, vector<1x128xf32>
    %5 = vector.broadcast %3 : vector<128x1xf32> to vector<128x128xf32>
    %6 = vector.broadcast %4 : vector<1x128xf32> to vector<128x128xf32>
    %7 = arith.addf %5, %6 : vector<128x128xf32>
    %cst = arith.constant 2.000000e-01 : f32
    %8 = vector.broadcast %cst : f32 to vector<128x128xf32>
    %9 = arith.mulf %8, %7 : vector<128x128xf32>
    %10 = arith.maximumf %7, %9 : vector<128x128xf32>
    %c0_4 = arith.constant 0 : index
    %c0_5 = arith.constant 0 : index
    %11 = vector.load %arg4[%c0_4, %c0_5] : memref<128x128xbf16, #tpu.memory_space<vmem>>, vector<128x128xbf16>
    %12 = arith.extf %11 : vector<128x128xbf16> to vector<128x128xf32>
    %13 = arith.addf %10, %12 : vector<128x128xf32>
    %c0_6 = arith.constant 0 : index
    %c0_7 = arith.constant 0 : index
    %14 = vector.load %arg7[%c0_6, %c0_7] : memref<128x1xf32, #tpu.memory_space<vmem>>, vector<128x1xf32>
    %cst_8 = arith.constant dense<0xFF800000> : vector<128xf32>
    %15 = vector.multi_reduction <maximumf>, %13, %cst_8 [1] : vector<128x128xf32> to vector<128xf32>
    %16 = vector.shape_cast %15 : vector<128xf32> to vector<128x1xf32>
    %17 = arith.maximumf %14, %16 : vector<128x1xf32>
    %18 = arith.subf %14, %17 : vector<128x1xf32>
    %19 = math.exp %18 : vector<128x1xf32>
    %20 = vector.broadcast %17 : vector<128x1xf32> to vector<128x128xf32>
    %21 = arith.subf %13, %20 : vector<128x128xf32>
    %22 = math.exp %21 : vector<128x128xf32>
    %c0_9 = arith.constant 0 : index
    %c0_10 = arith.constant 0 : index
    %23 = vector.load %arg8[%c0_9, %c0_10] : memref<128x1xf32, #tpu.memory_space<vmem>>, vector<128x1xf32>
    %24 = arith.mulf %19, %23 : vector<128x1xf32>
    %cst_11 = arith.constant dense<0.000000e+00> : vector<128xf32>
    %25 = vector.multi_reduction <add>, %22, %cst_11 [1] : vector<128x128xf32> to vector<128xf32>
    %26 = vector.shape_cast %25 : vector<128xf32> to vector<128x1xf32>
    %27 = arith.addf %24, %26 : vector<128x1xf32>
    %c0_12 = arith.constant 0 : index
    %c0_13 = arith.constant 0 : index
    %28 = vector.load %arg8[%c0_12, %c0_13] : memref<128x1xf32, #tpu.memory_space<vmem>>, vector<128x1xf32>
    tpu.vector_store %arg8[%c0_12, %c0_13], %27 {strides = array<i32>} : memref<128x1xf32, #tpu.memory_space<vmem>>, vector<128x1xf32>,
    %c0_14 = arith.constant 0 : index
    %c0_15 = arith.constant 0 : index
    %29 = vector.load %arg9[%c0_14, %c0_15] : memref<128x128xf32, #tpu.memory_space<vmem>>, vector<128x128xf32>
    %30 = vector.broadcast %19 : vector<128x1xf32> to vector<128x128xf32>
    %31 = arith.mulf %30, %29 : vector<128x128xf32>
    %32 = arith.truncf %22 : vector<128x128xf32> to vector<128x128xbf16>
    %c0_16 = arith.constant 0 : index
    %c0_17 = arith.constant 0 : index
    %33 = vector.load %arg5[%c0_16, %c0_17] : memref<128x128xbf16, #tpu.memory_space<vmem>>, vector<128x128xbf16>
    %cst_18 = arith.constant dense<0.000000e+00> : vector<128x128xf32>
    %34 = tpu.matmul %32, %33, %cst_18 {dimension_numbers = #tpu.dot_dimension_numbers<[1], [0], [0], [1], [0, 0, 1, 1], [], []>} : vector<128x128xbf16>, vector<128x128xbf16>, vector<128x128xf32> -> vector<128x128xf32>
    %35 = arith.addf %31, %34 : vector<128x128xf32>
    %c0_19 = arith.constant 0 : index
    %c0_20 = arith.constant 0 : index
    %36 = vector.load %arg9[%c0_19, %c0_20] : memref<128x128xf32, #tpu.memory_space<vmem>>, vector<128x128xf32>
    tpu.vector_store %arg9[%c0_19, %c0_20], %35 {strides = array<i32>} : memref<128x128xf32, #tpu.memory_space<vmem>>, vector<128x128xf32>,
    %c0_21 = arith.constant 0 : index
    %c0_22 = arith.constant 0 : index
    %37 = vector.load %arg7[%c0_21, %c0_22] : memref<128x1xf32, #tpu.memory_space<vmem>>, vector<128x1xf32>
    tpu.vector_store %arg7[%c0_21, %c0_22], %17 {strides = array<i32>} : memref<128x1xf32, #tpu.memory_space<vmem>>, vector<128x1xf32>,
    %c0_i32_23 = arith.constant 0 : i32
    %38 = arith.cmpi eq, %arg1, %c0_i32_23 : i32
    %39 = arith.extui %38 : i1 to i32
    %c0_i32_24 = arith.constant 0 : i32
    %40 = arith.cmpi ne, %39, %c0_i32_24 : i32
    scf.if %40 {
      %c0_25 = arith.constant 0 : index
      %c0_26 = arith.constant 0 : index
      %41 = vector.load %arg9[%c0_25, %c0_26] : memref<128x128xf32, #tpu.memory_space<vmem>>, vector<128x128xf32>
      %c0_27 = arith.constant 0 : index
      %c0_28 = arith.constant 0 : index
      %42 = vector.load %arg8[%c0_27, %c0_28] : memref<128x1xf32, #tpu.memory_space<vmem>>, vector<128x1xf32>
      %43 = tpu.reciprocal %42 {approx = true} : vector<128x1xf32> -> vector<128x1xf32>
      %44 = vector.broadcast %43 : vector<128x1xf32> to vector<128x128xf32>
      %45 = arith.mulf %41, %44 : vector<128x128xf32>
      %c0_29 = arith.constant 0 : index
      %c0_30 = arith.constant 0 : index
      %46 = vector.load %arg6[%c0_29, %c0_30] : memref<128x128xf32, #tpu.memory_space<vmem>>, vector<128x128xf32>
      tpu.vector_store %arg6[%c0_29, %c0_30], %45 {strides = array<i32>} : memref<128x128xf32, #tpu.memory_space<vmem>>, vector<128x128xf32>,
    } else {
    }
    return
  }
  func.func @transform_0(%arg0: i32, %arg1: i32) -> (i32, i32) {
    %c0_i32 = arith.constant 0 : i32
    %c0_i32_0 = arith.constant 0 : i32
    return %arg0, %c0_i32 : i32, i32
  }
  func.func @transform_1(%arg0: i32, %arg1: i32) -> (i32, i32) {
    %c0_i32 = arith.constant 0 : i32
    %c0_i32_0 = arith.constant 0 : i32
    return %c0_i32, %arg1 : i32, i32
  }
  func.func @transform_2(%arg0: i32, %arg1: i32) -> (i32, i32) {
    %c0_i32 = arith.constant 0 : i32
    return %arg0, %arg1 : i32, i32
  }
  func.func @transform_3(%arg0: i32, %arg1: i32) -> (i32, i32) {
    %c0_i32 = arith.constant 0 : i32
    %c0_i32_0 = arith.constant 0 : i32
    return %arg1, %c0_i32 : i32, i32
  }
  func.func @transform_4(%arg0: i32, %arg1: i32) -> (i32, i32) {
    %c0_i32 = arith.constant 0 : i32
    %c0_i32_0 = arith.constant 0 : i32
    return %arg0, %c0_i32 : i32, i32
  }
}

</mosaic_0001>

<llo_original>
// kernel: tpu_custom_call.1
$region0: #{tpu_custom_call.1}
  #allocation0 [shape = 'u32[]', space=smem, size = 0x4, offset = 0x4, fixed_abs, tag = 'smem constant byte address 0x4 - core index']
  #allocation1 [shape = 'u32[144,128]{1,0:T(1,128)}', space=vmem, size = 0x12000, scoped, tag = 'internal scratch']
  #allocation2 [shape = 'f32[128,1]{1,0:T(8,128)}', space=vmem, size = 0x10000, scoped, tag = 'scratch operand']
  #allocation3 [shape = 'f32[128,1]{1,0:T(8,128)}', space=vmem, size = 0x10000, scoped, tag = 'scratch operand']
  #allocation4 [shape = 'f32[128,128]{1,0:T(8,128)}', space=vmem, size = 0x10000, scoped, tag = 'scratch operand']
  %s0 = inlined_call_operand.hbm [shape: f32[128,1], index: 0, kind: input, shape index: {}]
  %s1 = inlined_call_operand.hbm [shape: f32[1,128], index: 1, kind: input, shape index: {}]
  %s2 = inlined_call_operand.hbm [shape: bf16[128,128], index: 2, kind: input, shape index: {}]
  %s3 = inlined_call_operand.hbm [shape: bf16[128,128], index: 3, kind: input, shape index: {}]
  %s4 = inlined_call_operand.hbm [shape: f32[128,128], index: 4, kind: output, shape index: {}]
  %s5 = sld [smem:[#allocation0]]
  $region50: #{tpu_custom_call.1} parent=0
    _
  %s7 = ssub.s32 1, %s5
  %s8 = scalar_select 0, %s7, %s5
  $region1: #{tpu_custom_call.1} parent=0
    #allocation5 [shape = 'u8[65536]{0}', space=vmem, size = 0x10000, scoped, tag = 'input window, operand 0, single buffered']
    #allocation6 [shape = 's32[1]{0}', space=sflag, size = 0x4, scoped, tag = 'scoped memory for tpu_custom_call.1']
    #allocation7 [shape = 's32[1]{0}', space=sflag, size = 0x4, scoped, tag = 'scoped memory for tpu_custom_call.1']
    #allocation8 [shape = 'u8[512]{0}', space=vmem, size = 0x400, scoped, tag = 'input window, operand 1, single buffered']
    #allocation9 [shape = 's32[1]{0}', space=sflag, size = 0x4, scoped, tag = 'scoped memory for tpu_custom_call.1']
    #allocation10 [shape = 'u8[32768]{0}', space=vmem, size = 0x8000, scoped, tag = 'input window, operand 2, single buffered']
    #allocation11 [shape = 'u8[32768]{0}', space=vmem, size = 0x8000, scoped, tag = 'input window, operand 3, single buffered']
    #allocation12 [shape = 's32[1]{0}', space=sflag, size = 0x4, scoped, tag = 'scoped memory for tpu_custom_call.1']
    #allocation13 [shape = 'u8[65536]{0}', space=vmem, size = 0x10000, scoped, tag = 'output window, operand 0, single buffered']
    %9 = vsyncpa [#allocation6], 0
    %10 = vsyncpa [#allocation9], 0
    %11 = vsyncpa [#allocation12], 0
    %12 = vsyncpa [#allocation7], 0
    // Predicated region
    $region2: #{tpu_custom_call.1} parent=1 // pred_check
      _
    $region3: #{tpu_custom_call.1} parent=1 // pred_check_branch
      %14 = sbr.rel (0) target = $region5
    $region4: #{tpu_custom_call.1} parent=1 // pred_region
      %s16 = ssub.s32 2048, 2048
      %17 = vsyncadd [#allocation6], %s16
      %s18 = sshll.u32 [#allocation5], 4
      %s19 = int_to_ptr.vmem [resolvable:$true] %s18
      %24 = dma.hbm_to_vmem [thread:$0]  %s0, 2048, %s19, [#allocation6], 128, 128, 8
    $region5: #{tpu_custom_call.1} parent=1 // pred_fallthru
      _
    // Predicated region
    $region6: #{tpu_custom_call.1} parent=1 // pred_check
      _
    $region7: #{tpu_custom_call.1} parent=1 // pred_check_branch
      %26 = sbr.rel (0) target = $region9
    $region8: #{tpu_custom_call.1} parent=1 // pred_region
      %s28 = ssub.s32 16, 16
      %29 = vsyncadd [#allocation9], %s28
      %s31 = sshll.u32 [#allocation8], 4
      %s32 = int_to_ptr.vmem [resolvable:$true] %s31
      %34 = dma.hbm_to_vmem [thread:$0]  %s1, 16, %s32, [#allocation9]
    $region9: #{tpu_custom_call.1} parent=1 // pred_fallthru
      _
    // Predicated region
    $region10: #{tpu_custom_call.1} parent=1 // pred_check
      _
    $region11: #{tpu_custom_call.1} parent=1 // pred_check_branch
      %36 = sbr.rel (0) target = $region13
    $region12: #{tpu_custom_call.1} parent=1 // pred_region
      %s38 = ssub.s32 1024, 1024
      %39 = vsyncadd [#allocation9], %s38
      %s40 = sshll.u32 [#allocation10], 4
      %s41 = int_to_ptr.vmem [resolvable:$true] %s40
      %46 = dma.hbm_to_vmem [thread:$0]  %s2, 1024, %s41, [#allocation9], 64, 64, 4
    $region13: #{tpu_custom_call.1} parent=1 // pred_fallthru
      _
    // Predicated region
    $region14: #{tpu_custom_call.1} parent=1 // pred_check
      _
    $region15: #{tpu_custom_call.1} parent=1 // pred_check_branch
      %48 = sbr.rel (0) target = $region17
    $region16: #{tpu_custom_call.1} parent=1 // pred_region
      %s50 = ssub.s32 1024, 1024
      %51 = vsyncadd [#allocation12], %s50
      %s52 = sshll.u32 [#allocation11], 4
      %s53 = int_to_ptr.vmem [resolvable:$true] %s52
      %58 = dma.hbm_to_vmem [thread:$0]  %s3, 1024, %s53, [#allocation12], 64, 64, 4
    $region17: #{tpu_custom_call.1} parent=1 // pred_fallthru
      _
    // Predicated region
    $region18: #{tpu_custom_call.1} parent=1 // pred_check
      _
    $region19: #{tpu_custom_call.1} parent=1 // pred_check_branch
      %60 = sbr.rel (0) target = $region21
    $region20: #{tpu_custom_call.1} parent=1 // pred_region
      %61 = dma.done [#allocation6], 2048
    $region21: #{tpu_custom_call.1} parent=1 // pred_fallthru
      _
    // Predicated region
    $region22: #{tpu_custom_call.1} parent=1 // pred_check
      _
    $region23: #{tpu_custom_call.1} parent=1 // pred_check_branch
      %63 = sbr.rel (0) target = $region25
    $region24: #{tpu_custom_call.1} parent=1 // pred_region
      %64 = dma.done [#allocation9], 16
    $region25: #{tpu_custom_call.1} parent=1 // pred_fallthru
      _
    // Predicated region
    $region26: #{tpu_custom_call.1} parent=1 // pred_check
      _
    $region27: #{tpu_custom_call.1} parent=1 // pred_check_branch
      %66 = sbr.rel (0) target = $region29
    $region28: #{tpu_custom_call.1} parent=1 // pred_region
      %67 = dma.done [#allocation9], 1024
    $region29: #{tpu_custom_call.1} parent=1 // pred_fallthru
      _
    // Predicated region
    $region30: #{tpu_custom_call.1} parent=1 // pred_check
      _
    $region31: #{tpu_custom_call.1} parent=1 // pred_check_branch
      %69 = sbr.rel (0) target = $region33
    $region32: #{tpu_custom_call.1} parent=1 // pred_region
      %70 = dma.done [#allocation12], 1024
    $region33: #{tpu_custom_call.1} parent=1 // pred_fallthru
      _
    %p72 = scmp.eq.s32.totalorder 0, 0
    // Predicated region
    $region34: #{tpu_custom_call.1} parent=1 // pred_check
      %p73 = pneg %p72
    $region35: #{tpu_custom_call.1} parent=1 // pred_check_branch
      %75 = sbr.rel (%p73) target = $region37
    $region36: #{tpu_custom_call.1} parent=1 // pred_region
      %vm76 = vcmask 7168
      %77 = vst.msk [vmem:[#allocation2] sm:$0xff] %vm76, -inf
      %78 = vst.msk [vmem:[#allocation2 + $0x8] sm:$0xff] %vm76, -inf
      %79 = vst.msk [vmem:[#allocation2 + $0x10] sm:$0xff] %vm76, -inf
      %80 = vst.msk [vmem:[#allocation2 + $0x18] sm:$0xff] %vm76, -inf
      %81 = vst.msk [vmem:[#allocation2 + $0x20] sm:$0xff] %vm76, -inf
      %82 = vst.msk [vmem:[#allocation2 + $0x28] sm:$0xff] %vm76, -inf
      %83 = vst.msk [vmem:[#allocation2 + $0x30] sm:$0xff] %vm76, -inf
      %84 = vst.msk [vmem:[#allocation2 + $0x38] sm:$0xff] %vm76, -inf
      %85 = vst.msk [vmem:[#allocation2 + $0x40] sm:$0xff] %vm76, -inf
      %86 = vst.msk [vmem:[#allocation2 + $0x48] sm:$0xff] %vm76, -inf
      %87 = vst.msk [vmem:[#allocation2 + $0x50] sm:$0xff] %vm76, -inf
      %88 = vst.msk [vmem:[#allocation2 + $0x58] sm:$0xff] %vm76, -inf
      %89 = vst.msk [vmem:[#allocation2 + $0x60] sm:$0xff] %vm76, -inf
      %90 = vst.msk [vmem:[#allocation2 + $0x68] sm:$0xff] %vm76, -inf
      %91 = vst.msk [vmem:[#allocation2 + $0x70] sm:$0xff] %vm76, -inf
      %92 = vst.msk [vmem:[#allocation2 + $0x78] sm:$0xff] %vm76, -inf
      %93 = vst.msk [vmem:[#allocation3] sm:$0xff] %vm76, 0.0
      %94 = vst.msk [vmem:[#allocation3 + $0x8] sm:$0xff] %vm76, 0.0
      %95 = vst.msk [vmem:[#allocation3 + $0x10] sm:$0xff] %vm76, 0.0
      %96 = vst.msk [vmem:[#allocation3 + $0x18] sm:$0xff] %vm76, 0.0
      %97 = vst.msk [vmem:[#allocation3 + $0x20] sm:$0xff] %vm76, 0.0
      %98 = vst.msk [vmem:[#allocation3 + $0x28] sm:$0xff] %vm76, 0.0
      %99 = vst.msk [vmem:[#allocation3 + $0x30] sm:$0xff] %vm76, 0.0
      %100 = vst.msk [vmem:[#allocation3 + $0x38] sm:$0xff] %vm76, 0.0
      %101 = vst.msk [vmem:[#allocation3 + $0x40] sm:$0xff] %vm76, 0.0
      %102 = vst.msk [vmem:[#allocation3 + $0x48] sm:$0xff] %vm76, 0.0
      %103 = vst.msk [vmem:[#allocation3 + $0x50] sm:$0xff] %vm76, 0.0
      %104 = vst.msk [vmem:[#allocation3 + $0x58] sm:$0xff] %vm76, 0.0
      %105 = vst.msk [vmem:[#allocation3 + $0x60] sm:$0xff] %vm76, 0.0
      %106 = vst.msk [vmem:[#allocation3 + $0x68] sm:$0xff] %vm76, 0.0
      %107 = vst.msk [vmem:[#allocation3 + $0x70] sm:$0xff] %vm76, 0.0
      %108 = vst.msk [vmem:[#allocation3 + $0x78] sm:$0xff] %vm76, 0.0
      %109 = vst [vmem:[#allocation4] sm:$0xff] 0.0
      %110 = vst [vmem:[#allocation4 + $0x8] sm:$0xff] 0.0
      %111 = vst [vmem:[#allocation4 + $0x10] sm:$0xff] 0.0
      %112 = vst [vmem:[#allocation4 + $0x18] sm:$0xff] 0.0
      %113 = vst [vmem:[#allocation4 + $0x20] sm:$0xff] 0.0
      %114 = vst [vmem:[#allocation4 + $0x28] sm:$0xff] 0.0
      %115 = vst [vmem:[#allocation4 + $0x30] sm:$0xff] 0.0
      %116 = vst [vmem:[#allocation4 + $0x38] sm:$0xff] 0.0
      %117 = vst [vmem:[#allocation4 + $0x40] sm:$0xff] 0.0
      %118 = vst [vmem:[#allocation4 + $0x48] sm:$0xff] 0.0
      %119 = vst [vmem:[#allocation4 + $0x50] sm:$0xff] 0.0
      %120 = vst [vmem:[#allocation4 + $0x58] sm:$0xff] 0.0
      %121 = vst [vmem:[#allocation4 + $0x60] sm:$0xff] 0.0
      %122 = vst [vmem:[#allocation4 + $0x68] sm:$0xff] 0.0
      %123 = vst [vmem:[#allocation4 + $0x70] sm:$0xff] 0.0
      %124 = vst [vmem:[#allocation4 + $0x78] sm:$0xff] 0.0
    $region37: #{tpu_custom_call.1} parent=1 // pred_fallthru
      _
    %v125 = vld [vmem:[#allocation5] sm:$0xff]
    %v126 = vld [vmem:[#allocation5 + $0x8] sm:$0xff]
    %v127 = vld [vmem:[#allocation5 + $0x10] sm:$0xff]
    %v128 = vld [vmem:[#allocation5 + $0x18] sm:$0xff]
    %v129 = vld [vmem:[#allocation5 + $0x20] sm:$0xff]
    %v130 = vld [vmem:[#allocation5 + $0x28] sm:$0xff]
    %v131 = vld [vmem:[#allocation5 + $0x30] sm:$0xff]
    %v132 = vld [vmem:[#allocation5 + $0x38] sm:$0xff]
    %v133 = vld [vmem:[#allocation5 + $0x40] sm:$0xff]
    %v134 = vld [vmem:[#allocation5 + $0x48] sm:$0xff]
    %v135 = vld [vmem:[#allocation5 + $0x50] sm:$0xff]
    %v136 = vld [vmem:[#allocation5 + $0x58] sm:$0xff]
    %v137 = vld [vmem:[#allocation5 + $0x60] sm:$0xff]
    %v138 = vld [vmem:[#allocation5 + $0x68] sm:$0xff]
    %v139 = vld [vmem:[#allocation5 + $0x70] sm:$0xff]
    %v140 = vld [vmem:[#allocation5 + $0x78] sm:$0xff]
    %v141 = vld [vmem:[#allocation8] sm:$0x1]
    %143 = vset.pattern.permute.xlu0 0
    %144 = vperm.xlu0 %143, %v125
    %v145 = vpop.permute.xlu0 %144
    %148 = vset.pattern.permute.xlu0 0
    %149 = vperm.xlu0 %148, %v126
    %v150 = vpop.permute.xlu0 %149
    %153 = vset.pattern.permute.xlu0 0
    %154 = vperm.xlu0 %153, %v127
    %v155 = vpop.permute.xlu0 %154
    %158 = vset.pattern.permute.xlu0 0
    %159 = vperm.xlu0 %158, %v128
    %v160 = vpop.permute.xlu0 %159
    %163 = vset.pattern.permute.xlu0 0
    %164 = vperm.xlu0 %163, %v129
    %v165 = vpop.permute.xlu0 %164
    %168 = vset.pattern.permute.xlu0 0
    %169 = vperm.xlu0 %168, %v130
    %v170 = vpop.permute.xlu0 %169
    %173 = vset.pattern.permute.xlu0 0
    %174 = vperm.xlu0 %173, %v131
    %v175 = vpop.permute.xlu0 %174
    %178 = vset.pattern.permute.xlu0 0
    %179 = vperm.xlu0 %178, %v132
    %v180 = vpop.permute.xlu0 %179
    %183 = vset.pattern.permute.xlu0 0
    %184 = vperm.xlu0 %183, %v133
    %v185 = vpop.permute.xlu0 %184
    %188 = vset.pattern.permute.xlu0 0
    %189 = vperm.xlu0 %188, %v134
    %v190 = vpop.permute.xlu0 %189
    %193 = vset.pattern.permute.xlu0 0
    %194 = vperm.xlu0 %193, %v135
    %v195 = vpop.permute.xlu0 %194
    %198 = vset.pattern.permute.xlu0 0
    %199 = vperm.xlu0 %198, %v136
    %v200 = vpop.permute.xlu0 %199
    %203 = vset.pattern.permute.xlu0 0
    %204 = vperm.xlu0 %203, %v137
    %v205 = vpop.permute.xlu0 %204
    %208 = vset.pattern.permute.xlu0 0
    %209 = vperm.xlu0 %208, %v138
    %v210 = vpop.permute.xlu0 %209
    %213 = vset.pattern.permute.xlu0 0
    %214 = vperm.xlu0 %213, %v139
    %v215 = vpop.permute.xlu0 %214
    %218 = vset.pattern.permute.xlu0 0
    %219 = vperm.xlu0 %218, %v140
    %v220 = vpop.permute.xlu0 %219
    %v223 = vlaneseq
    %v224 = vshrl.u32 %v223, 7
    %v225 = vsub.s32 0, %v224
    %v226 = vrot.slane %v141, %v225
    %v228 = vadd.f32 %v145, %v226
    %v229 = vadd.f32 %v150, %v226
    %v230 = vadd.f32 %v155, %v226
    %v231 = vadd.f32 %v160, %v226
    %v232 = vadd.f32 %v165, %v226
    %v233 = vadd.f32 %v170, %v226
    %v234 = vadd.f32 %v175, %v226
    %v235 = vadd.f32 %v180, %v226
    %v236 = vadd.f32 %v185, %v226
    %v237 = vadd.f32 %v190, %v226
    %v238 = vadd.f32 %v195, %v226
    %v239 = vadd.f32 %v200, %v226
    %v240 = vadd.f32 %v205, %v226
    %v241 = vadd.f32 %v210, %v226
    %v242 = vadd.f32 %v215, %v226
    %v243 = vadd.f32 %v220, %v226
    %v244 = vmul.f32 %v228, 0.2
    %v245 = vmul.f32 %v229, 0.2
    %v246 = vmul.f32 %v230, 0.2
    %v247 = vmul.f32 %v231, 0.2
    %v248 = vmul.f32 %v232, 0.2
    %v249 = vmul.f32 %v233, 0.2
    %v250 = vmul.f32 %v234, 0.2
    %v251 = vmul.f32 %v235, 0.2
    %v252 = vmul.f32 %v236, 0.2
    %v253 = vmul.f32 %v237, 0.2
    %v254 = vmul.f32 %v238, 0.2
    %v255 = vmul.f32 %v239, 0.2
    %v256 = vmul.f32 %v240, 0.2
    %v257 = vmul.f32 %v241, 0.2
    %v258 = vmul.f32 %v242, 0.2
    %v259 = vmul.f32 %v243, 0.2
    %v260 = vmax.f32 %v228, %v244
    %v261 = vmax.f32 %v229, %v245
    %v262 = vmax.f32 %v230, %v246
    %v263 = vmax.f32 %v231, %v247
    %v264 = vmax.f32 %v232, %v248
    %v265 = vmax.f32 %v233, %v249
    %v266 = vmax.f32 %v234, %v250
    %v267 = vmax.f32 %v235, %v251
    %v268 = vmax.f32 %v236, %v252
    %v269 = vmax.f32 %v237, %v253
    %v270 = vmax.f32 %v238, %v254
    %v271 = vmax.f32 %v239, %v255
    %v272 = vmax.f32 %v240, %v256
    %v273 = vmax.f32 %v241, %v257
    %v274 = vmax.f32 %v242, %v258
    %v275 = vmax.f32 %v243, %v259
    %v276 = vld [vmem:[#allocation10] sm:$0xf]
    %v277 = vld [vmem:[#allocation10 + $0x4] sm:$0xf]
    %v278 = vld [vmem:[#allocation10 + $0x8] sm:$0xf]
    %v279 = vld [vmem:[#allocation10 + $0xc] sm:$0xf]
    %v280 = vld [vmem:[#allocation10 + $0x10] sm:$0xf]
    %v281 = vld [vmem:[#allocation10 + $0x14] sm:$0xf]
    %v282 = vld [vmem:[#allocation10 + $0x18] sm:$0xf]
    %v283 = vld [vmem:[#allocation10 + $0x1c] sm:$0xf]
    %v284 = vld [vmem:[#allocation10 + $0x20] sm:$0xf]
    %v285 = vld [vmem:[#allocation10 + $0x24] sm:$0xf]
    %v286 = vld [vmem:[#allocation10 + $0x28] sm:$0xf]
    %v287 = vld [vmem:[#allocation10 + $0x2c] sm:$0xf]
    %v288 = vld [vmem:[#allocation10 + $0x30] sm:$0xf]
    %v289 = vld [vmem:[#allocation10 + $0x34] sm:$0xf]
    %v290 = vld [vmem:[#allocation10 + $0x38] sm:$0xf]
    %v291 = vld [vmem:[#allocation10 + $0x3c] sm:$0xf]
    %v292 = vunpack.c.l.bf16 %v276
    %v293 = vunpack.c.l.bf16 %v277
    %v294 = vunpack.c.l.bf16 %v278
    %v295 = vunpack.c.l.bf16 %v279
    %v296 = vunpack.c.l.bf16 %v280
    %v297 = vunpack.c.l.bf16 %v281
    %v298 = vunpack.c.l.bf16 %v282
    %v299 = vunpack.c.l.bf16 %v283
    %v300 = vunpack.c.l.bf16 %v284
    %v301 = vunpack.c.l.bf16 %v285
    %v302 = vunpack.c.l.bf16 %v286
    %v303 = vunpack.c.l.bf16 %v287
    %v304 = vunpack.c.l.bf16 %v288
    %v305 = vunpack.c.l.bf16 %v289
    %v306 = vunpack.c.l.bf16 %v290
    %v307 = vunpack.c.l.bf16 %v291
    %v308 = vadd.f32 %v260, %v292
    %v309 = vadd.f32 %v261, %v293
    %v310 = vadd.f32 %v262, %v294
    %v311 = vadd.f32 %v263, %v295
    %v312 = vadd.f32 %v264, %v296
    %v313 = vadd.f32 %v265, %v297
    %v314 = vadd.f32 %v266, %v298
    %v315 = vadd.f32 %v267, %v299
    %v316 = vadd.f32 %v268, %v300
    %v317 = vadd.f32 %v269, %v301
    %v318 = vadd.f32 %v270, %v302
    %v319 = vadd.f32 %v271, %v303
    %v320 = vadd.f32 %v272, %v304
    %v321 = vadd.f32 %v273, %v305
    %v322 = vadd.f32 %v274, %v306
    %v323 = vadd.f32 %v275, %v307
    %v324 = vld [vmem:[#allocation2] sm:$0xff]
    %v325 = vld [vmem:[#allocation2 + $0x8] sm:$0xff]
    %v326 = vld [vmem:[#allocation2 + $0x10] sm:$0xff]
    %v327 = vld [vmem:[#allocation2 + $0x18] sm:$0xff]
    %v328 = vld [vmem:[#allocation2 + $0x20] sm:$0xff]
    %v329 = vld [vmem:[#allocation2 + $0x28] sm:$0xff]
    %v330 = vld [vmem:[#allocation2 + $0x30] sm:$0xff]
    %v331 = vld [vmem:[#allocation2 + $0x38] sm:$0xff]
    %v332 = vld [vmem:[#allocation2 + $0x40] sm:$0xff]
    %v333 = vld [vmem:[#allocation2 + $0x48] sm:$0xff]
    %v334 = vld [vmem:[#allocation2 + $0x50] sm:$0xff]
    %v335 = vld [vmem:[#allocation2 + $0x58] sm:$0xff]
    %v336 = vld [vmem:[#allocation2 + $0x60] sm:$0xff]
    %v337 = vld [vmem:[#allocation2 + $0x68] sm:$0xff]
    %v338 = vld [vmem:[#allocation2 + $0x70] sm:$0xff]
    %v339 = vld [vmem:[#allocation2 + $0x78] sm:$0xff]
    %340 = vmax.xlane.f32.xlu0 %v308
    %v341 = vpop.xlane.xlu0 %340
    %342 = vmax.xlane.f32.xlu0 %v309
    %v343 = vpop.xlane.xlu0 %342
    %344 = vmax.xlane.f32.xlu0 %v310
    %v345 = vpop.xlane.xlu0 %344
    %346 = vmax.xlane.f32.xlu0 %v311
    %v347 = vpop.xlane.xlu0 %346
    %348 = vmax.xlane.f32.xlu0 %v312
    %v349 = vpop.xlane.xlu0 %348
    %350 = vmax.xlane.f32.xlu0 %v313
    %v351 = vpop.xlane.xlu0 %350
    %352 = vmax.xlane.f32.xlu0 %v314
    %v353 = vpop.xlane.xlu0 %352
    %354 = vmax.xlane.f32.xlu0 %v315
    %v355 = vpop.xlane.xlu0 %354
    %356 = vmax.xlane.f32.xlu0 %v316
    %v357 = vpop.xlane.xlu0 %356
    %358 = vmax.xlane.f32.xlu0 %v317
    %v359 = vpop.xlane.xlu0 %358
    %360 = vmax.xlane.f32.xlu0 %v318
    %v361 = vpop.xlane.xlu0 %360
    %362 = vmax.xlane.f32.xlu0 %v319
    %v363 = vpop.xlane.xlu0 %362
    %364 = vmax.xlane.f32.xlu0 %v320
    %v365 = vpop.xlane.xlu0 %364
    %366 = vmax.xlane.f32.xlu0 %v321
    %v367 = vpop.xlane.xlu0 %366
    %368 = vmax.xlane.f32.xlu0 %v322
    %v369 = vpop.xlane.xlu0 %368
    %370 = vmax.xlane.f32.xlu0 %v323
    %v371 = vpop.xlane.xlu0 %370
    %v372 = vmax.f32 %v324, %v341
    %v373 = vmax.f32 %v325, %v343
    %v374 = vmax.f32 %v326, %v345
    %v375 = vmax.f32 %v327, %v347
    %v376 = vmax.f32 %v328, %v349
    %v377 = vmax.f32 %v329, %v351
    %v378 = vmax.f32 %v330, %v353
    %v379 = vmax.f32 %v331, %v355
    %v380 = vmax.f32 %v332, %v357
    %v381 = vmax.f32 %v333, %v359
    %v382 = vmax.f32 %v334, %v361
    %v383 = vmax.f32 %v335, %v363
    %v384 = vmax.f32 %v336, %v365
    %v385 = vmax.f32 %v337, %v367
    %v386 = vmax.f32 %v338, %v369
    %v387 = vmax.f32 %v339, %v371
    %v388 = vsub.f32 %v324, %v372
    %v389 = vsub.f32 %v325, %v373
    %v390 = vsub.f32 %v326, %v374
    %v391 = vsub.f32 %v327, %v375
    %v392 = vsub.f32 %v328, %v376
    %v393 = vsub.f32 %v329, %v377
    %v394 = vsub.f32 %v330, %v378
    %v395 = vsub.f32 %v331, %v379
    %v396 = vsub.f32 %v332, %v380
    %v397 = vsub.f32 %v333, %v381
    %v398 = vsub.f32 %v334, %v382
    %v399 = vsub.f32 %v335, %v383
    %v400 = vsub.f32 %v336, %v384
    %v401 = vsub.f32 %v337, %v385
    %v402 = vsub.f32 %v338, %v386
    %v403 = vsub.f32 %v339, %v387
    %v404 = vmul.f32 %v388, 1.442695
    %v405 = vpow.pop %v404
    %v406 = vmul.f32 %v389, 1.442695
    %v407 = vpow.pop %v406
    %v408 = vmul.f32 %v390, 1.442695
    %v409 = vpow.pop %v408
    %v410 = vmul.f32 %v391, 1.442695
    %v411 = vpow.pop %v410
    %v412 = vmul.f32 %v392, 1.442695
    %v413 = vpow.pop %v412
    %v414 = vmul.f32 %v393, 1.442695
    %v415 = vpow.pop %v414
    %v416 = vmul.f32 %v394, 1.442695
    %v417 = vpow.pop %v416
    %v418 = vmul.f32 %v395, 1.442695
    %v419 = vpow.pop %v418
    %v420 = vmul.f32 %v396, 1.442695
    %v421 = vpow.pop %v420
    %v422 = vmul.f32 %v397, 1.442695
    %v423 = vpow.pop %v422
    %v424 = vmul.f32 %v398, 1.442695
    %v425 = vpow.pop %v424
    %v426 = vmul.f32 %v399, 1.442695
    %v427 = vpow.pop %v426
    %v428 = vmul.f32 %v400, 1.442695
    %v429 = vpow.pop %v428
    %v430 = vmul.f32 %v401, 1.442695
    %v431 = vpow.pop %v430
    %v432 = vmul.f32 %v402, 1.442695
    %v433 = vpow.pop %v432
    %v434 = vmul.f32 %v403, 1.442695
    %v435 = vpow.pop %v434
    %437 = vset.pattern.permute.xlu0 0
    %438 = vperm.xlu0 %437, %v372
    %v439 = vpop.permute.xlu0 %438
    %442 = vset.pattern.permute.xlu0 0
    %443 = vperm.xlu0 %442, %v373
    %v444 = vpop.permute.xlu0 %443
    %447 = vset.pattern.permute.xlu0 0
    %448 = vperm.xlu0 %447, %v374
    %v449 = vpop.permute.xlu0 %448
    %452 = vset.pattern.permute.xlu0 0
    %453 = vperm.xlu0 %452, %v375
    %v454 = vpop.permute.xlu0 %453
    %457 = vset.pattern.permute.xlu0 0
    %458 = vperm.xlu0 %457, %v376
    %v459 = vpop.permute.xlu0 %458
    %462 = vset.pattern.permute.xlu0 0
    %463 = vperm.xlu0 %462, %v377
    %v464 = vpop.permute.xlu0 %463
    %467 = vset.pattern.permute.xlu0 0
    %468 = vperm.xlu0 %467, %v378
    %v469 = vpop.permute.xlu0 %468
    %472 = vset.pattern.permute.xlu0 0
    %473 = vperm.xlu0 %472, %v379
    %v474 = vpop.permute.xlu0 %473
    %477 = vset.pattern.permute.xlu0 0
    %478 = vperm.xlu0 %477, %v380
    %v479 = vpop.permute.xlu0 %478
    %482 = vset.pattern.permute.xlu0 0
    %483 = vperm.xlu0 %482, %v381
    %v484 = vpop.permute.xlu0 %483
    %487 = vset.pattern.permute.xlu0 0
    %488 = vperm.xlu0 %487, %v382
    %v489 = vpop.permute.xlu0 %488
    %492 = vset.pattern.permute.xlu0 0
    %493 = vperm.xlu0 %492, %v383
    %v494 = vpop.permute.xlu0 %493
    %497 = vset.pattern.permute.xlu0 0
    %498 = vperm.xlu0 %497, %v384
    %v499 = vpop.permute.xlu0 %498
    %502 = vset.pattern.permute.xlu0 0
    %503 = vperm.xlu0 %502, %v385
    %v504 = vpop.permute.xlu0 %503
    %507 = vset.pattern.permute.xlu0 0
    %508 = vperm.xlu0 %507, %v386
    %v509 = vpop.permute.xlu0 %508
    %512 = vset.pattern.permute.xlu0 0
    %513 = vperm.xlu0 %512, %v387
    %v514 = vpop.permute.xlu0 %513
    %v516 = vsub.f32 %v308, %v439
    %v517 = vsub.f32 %v309, %v444
    %v518 = vsub.f32 %v310, %v449
    %v519 = vsub.f32 %v311, %v454
    %v520 = vsub.f32 %v312, %v459
    %v521 = vsub.f32 %v313, %v464
    %v522 = vsub.f32 %v314, %v469
    %v523 = vsub.f32 %v315, %v474
    %v524 = vsub.f32 %v316, %v479
    %v525 = vsub.f32 %v317, %v484
    %v526 = vsub.f32 %v318, %v489
    %v527 = vsub.f32 %v319, %v494
    %v528 = vsub.f32 %v320, %v499
    %v529 = vsub.f32 %v321, %v504
    %v530 = vsub.f32 %v322, %v509
    %v531 = vsub.f32 %v323, %v514
    %v532 = vmul.f32 %v516, 1.442695
    %v533 = vpow.pop %v532
    %v534 = vmul.f32 %v517, 1.442695
    %v535 = vpow.pop %v534
    %v536 = vmul.f32 %v518, 1.442695
    %v537 = vpow.pop %v536
    %v538 = vmul.f32 %v519, 1.442695
    %v539 = vpow.pop %v538
    %v540 = vmul.f32 %v520, 1.442695
    %v541 = vpow.pop %v540
    %v542 = vmul.f32 %v521, 1.442695
    %v543 = vpow.pop %v542
    %v544 = vmul.f32 %v522, 1.442695
    %v545 = vpow.pop %v544
    %v546 = vmul.f32 %v523, 1.442695
    %v547 = vpow.pop %v546
    %v548 = vmul.f32 %v524, 1.442695
    %v549 = vpow.pop %v548
    %v550 = vmul.f32 %v525, 1.442695
    %v551 = vpow.pop %v550
    %v552 = vmul.f32 %v526, 1.442695
    %v553 = vpow.pop %v552
    %v554 = vmul.f32 %v527, 1.442695
    %v555 = vpow.pop %v554
    %v556 = vmul.f32 %v528, 1.442695
    %v557 = vpow.pop %v556
    %v558 = vmul.f32 %v529, 1.442695
    %v559 = vpow.pop %v558
    %v560 = vmul.f32 %v530, 1.442695
    %v561 = vpow.pop %v560
    %v562 = vmul.f32 %v531, 1.442695
    %v563 = vpow.pop %v562
    %v564 = vld [vmem:[#allocation3] sm:$0xff]
    %v565 = vld [vmem:[#allocation3 + $0x8] sm:$0xff]
    %v566 = vld [vmem:[#allocation3 + $0x10] sm:$0xff]
    %v567 = vld [vmem:[#allocation3 + $0x18] sm:$0xff]
    %v568 = vld [vmem:[#allocation3 + $0x20] sm:$0xff]
    %v569 = vld [vmem:[#allocation3 + $0x28] sm:$0xff]
    %v570 = vld [vmem:[#allocation3 + $0x30] sm:$0xff]
    %v571 = vld [vmem:[#allocation3 + $0x38] sm:$0xff]
    %v572 = vld [vmem:[#allocation3 + $0x40] sm:$0xff]
    %v573 = vld [vmem:[#allocation3 + $0x48] sm:$0xff]
    %v574 = vld [vmem:[#allocation3 + $0x50] sm:$0xff]
    %v575 = vld [vmem:[#allocation3 + $0x58] sm:$0xff]
    %v576 = vld [vmem:[#allocation3 + $0x60] sm:$0xff]
    %v577 = vld [vmem:[#allocation3 + $0x68] sm:$0xff]
    %v578 = vld [vmem:[#allocation3 + $0x70] sm:$0xff]
    %v579 = vld [vmem:[#allocation3 + $0x78] sm:$0xff]
    %v580 = vmul.f32 %v405, %v564
    %v581 = vmul.f32 %v407, %v565
    %v582 = vmul.f32 %v409, %v566
    %v583 = vmul.f32 %v411, %v567
    %v584 = vmul.f32 %v413, %v568
    %v585 = vmul.f32 %v415, %v569
    %v586 = vmul.f32 %v417, %v570
    %v587 = vmul.f32 %v419, %v571
    %v588 = vmul.f32 %v421, %v572
    %v589 = vmul.f32 %v423, %v573
    %v590 = vmul.f32 %v425, %v574
    %v591 = vmul.f32 %v427, %v575
    %v592 = vmul.f32 %v429, %v576
    %v593 = vmul.f32 %v431, %v577
    %v594 = vmul.f32 %v433, %v578
    %v595 = vmul.f32 %v435, %v579
    %596 = vadd.xlane.f32.xlu0 %v533
    %v597 = vpop.xlane.xlu0 %596
    %598 = vadd.xlane.f32.xlu0 %v535
    %v599 = vpop.xlane.xlu0 %598
    %600 = vadd.xlane.f32.xlu0 %v537
    %v601 = vpop.xlane.xlu0 %600
    %602 = vadd.xlane.f32.xlu0 %v539
    %v603 = vpop.xlane.xlu0 %602
    %604 = vadd.xlane.f32.xlu0 %v541
    %v605 = vpop.xlane.xlu0 %604
    %606 = vadd.xlane.f32.xlu0 %v543
    %v607 = vpop.xlane.xlu0 %606
    %608 = vadd.xlane.f32.xlu0 %v545
    %v609 = vpop.xlane.xlu0 %608
    %610 = vadd.xlane.f32.xlu0 %v547
    %v611 = vpop.xlane.xlu0 %610
    %612 = vadd.xlane.f32.xlu0 %v549
    %v613 = vpop.xlane.xlu0 %612
    %614 = vadd.xlane.f32.xlu0 %v551
    %v615 = vpop.xlane.xlu0 %614
    %616 = vadd.xlane.f32.xlu0 %v553
    %v617 = vpop.xlane.xlu0 %616
    %618 = vadd.xlane.f32.xlu0 %v555
    %v619 = vpop.xlane.xlu0 %618
    %620 = vadd.xlane.f32.xlu0 %v557
    %v621 = vpop.xlane.xlu0 %620
    %622 = vadd.xlane.f32.xlu0 %v559
    %v623 = vpop.xlane.xlu0 %622
    %624 = vadd.xlane.f32.xlu0 %v561
    %v625 = vpop.xlane.xlu0 %624
    %626 = vadd.xlane.f32.xlu0 %v563
    %v627 = vpop.xlane.xlu0 %626
    %v628 = vadd.f32 %v580, %v597
    %v629 = vadd.f32 %v581, %v599
    %v630 = vadd.f32 %v582, %v601
    %v631 = vadd.f32 %v583, %v603
    %v632 = vadd.f32 %v584, %v605
    %v633 = vadd.f32 %v585, %v607
    %v634 = vadd.f32 %v586, %v609
    %v635 = vadd.f32 %v587, %v611
    %v636 = vadd.f32 %v588, %v613
    %v637 = vadd.f32 %v589, %v615
    %v638 = vadd.f32 %v590, %v617
    %v639 = vadd.f32 %v591, %v619
    %v640 = vadd.f32 %v592, %v621
    %v641 = vadd.f32 %v593, %v623
    %v642 = vadd.f32 %v594, %v625
    %v643 = vadd.f32 %v595, %v627
    %vm644 = vcmask 7168
    %645 = vst.msk [vmem:[#allocation3] sm:$0xff] %vm644, %v628
    %646 = vst.msk [vmem:[#allocation3 + $0x8] sm:$0xff] %vm644, %v629
    %647 = vst.msk [vmem:[#allocation3 + $0x10] sm:$0xff] %vm644, %v630
    %648 = vst.msk [vmem:[#allocation3 + $0x18] sm:$0xff] %vm644, %v631
    %649 = vst.msk [vmem:[#allocation3 + $0x20] sm:$0xff] %vm644, %v632
    %650 = vst.msk [vmem:[#allocation3 + $0x28] sm:$0xff] %vm644, %v633
    %651 = vst.msk [vmem:[#allocation3 + $0x30] sm:$0xff] %vm644, %v634
    %652 = vst.msk [vmem:[#allocation3 + $0x38] sm:$0xff] %vm644, %v635
    %653 = vst.msk [vmem:[#allocation3 + $0x40] sm:$0xff] %vm644, %v636
    %654 = vst.msk [vmem:[#allocation3 + $0x48] sm:$0xff] %vm644, %v637
    %655 = vst.msk [vmem:[#allocation3 + $0x50] sm:$0xff] %vm644, %v638
    %656 = vst.msk [vmem:[#allocation3 + $0x58] sm:$0xff] %vm644, %v639
    %657 = vst.msk [vmem:[#allocation3 + $0x60] sm:$0xff] %vm644, %v640
    %658 = vst.msk [vmem:[#allocation3 + $0x68] sm:$0xff] %vm644, %v641
    %659 = vst.msk [vmem:[#allocation3 + $0x70] sm:$0xff] %vm644, %v642
    %660 = vst.msk [vmem:[#allocation3 + $0x78] sm:$0xff] %vm644, %v643
    %v661 = vld [vmem:[#allocation4] sm:$0xff]
    %v662 = vld [vmem:[#allocation4 + $0x8] sm:$0xff]
    %v663 = vld [vmem:[#allocation4 + $0x10] sm:$0xff]
    %v664 = vld [vmem:[#allocation4 + $0x18] sm:$0xff]
    %v665 = vld [vmem:[#allocation4 + $0x20] sm:$0xff]
    %v666 = vld [vmem:[#allocation4 + $0x28] sm:$0xff]
    %v667 = vld [vmem:[#allocation4 + $0x30] sm:$0xff]
    %v668 = vld [vmem:[#allocation4 + $0x38] sm:$0xff]
    %v669 = vld [vmem:[#allocation4 + $0x40] sm:$0xff]
    %v670 = vld [vmem:[#allocation4 + $0x48] sm:$0xff]
    %v671 = vld [vmem:[#allocation4 + $0x50] sm:$0xff]
    %v672 = vld [vmem:[#allocation4 + $0x58] sm:$0xff]
    %v673 = vld [vmem:[#allocation4 + $0x60] sm:$0xff]
    %v674 = vld [vmem:[#allocation4 + $0x68] sm:$0xff]
    %v675 = vld [vmem:[#allocation4 + $0x70] sm:$0xff]
    %v676 = vld [vmem:[#allocation4 + $0x78] sm:$0xff]
    %678 = vset.pattern.permute.xlu0 0
    %679 = vperm.xlu0 %678, %v405
    %v680 = vpop.permute.xlu0 %679
    %683 = vset.pattern.permute.xlu0 0
    %684 = vperm.xlu0 %683, %v407
    %v685 = vpop.permute.xlu0 %684
    %688 = vset.pattern.permute.xlu0 0
    %689 = vperm.xlu0 %688, %v409
    %v690 = vpop.permute.xlu0 %689
    %693 = vset.pattern.permute.xlu0 0
    %694 = vperm.xlu0 %693, %v411
    %v695 = vpop.permute.xlu0 %694
    %698 = vset.pattern.permute.xlu0 0
    %699 = vperm.xlu0 %698, %v413
    %v700 = vpop.permute.xlu0 %699
    %703 = vset.pattern.permute.xlu0 0
    %704 = vperm.xlu0 %703, %v415
    %v705 = vpop.permute.xlu0 %704
    %708 = vset.pattern.permute.xlu0 0
    %709 = vperm.xlu0 %708, %v417
    %v710 = vpop.permute.xlu0 %709
    %713 = vset.pattern.permute.xlu0 0
    %714 = vperm.xlu0 %713, %v419
    %v715 = vpop.permute.xlu0 %714
    %718 = vset.pattern.permute.xlu0 0
    %719 = vperm.xlu0 %718, %v421
    %v720 = vpop.permute.xlu0 %719
    %723 = vset.pattern.permute.xlu0 0
    %724 = vperm.xlu0 %723, %v423
    %v725 = vpop.permute.xlu0 %724
    %728 = vset.pattern.permute.xlu0 0
    %729 = vperm.xlu0 %728, %v425
    %v730 = vpop.permute.xlu0 %729
    %733 = vset.pattern.permute.xlu0 0
    %734 = vperm.xlu0 %733, %v427
    %v735 = vpop.permute.xlu0 %734
    %738 = vset.pattern.permute.xlu0 0
    %739 = vperm.xlu0 %738, %v429
    %v740 = vpop.permute.xlu0 %739
    %743 = vset.pattern.permute.xlu0 0
    %744 = vperm.xlu0 %743, %v431
    %v745 = vpop.permute.xlu0 %744
    %748 = vset.pattern.permute.xlu0 0
    %749 = vperm.xlu0 %748, %v433
    %v750 = vpop.permute.xlu0 %749
    %753 = vset.pattern.permute.xlu0 0
    %754 = vperm.xlu0 %753, %v435
    %v755 = vpop.permute.xlu0 %754
    %v757 = vmul.f32 %v680, %v661
    %v758 = vmul.f32 %v685, %v662
    %v759 = vmul.f32 %v690, %v663
    %v760 = vmul.f32 %v695, %v664
    %v761 = vmul.f32 %v700, %v665
    %v762 = vmul.f32 %v705, %v666
    %v763 = vmul.f32 %v710, %v667
    %v764 = vmul.f32 %v715, %v668
    %v765 = vmul.f32 %v720, %v669
    %v766 = vmul.f32 %v725, %v670
    %v767 = vmul.f32 %v730, %v671
    %v768 = vmul.f32 %v735, %v672
    %v769 = vmul.f32 %v740, %v673
    %v770 = vmul.f32 %v745, %v674
    %v771 = vmul.f32 %v750, %v675
    %v772 = vmul.f32 %v755, %v676
    %v773 = vpack.c.bf16 %v535, %v533
    %v774 = vpack.c.bf16 %v539, %v537
    %v775 = vpack.c.bf16 %v543, %v541
    %v776 = vpack.c.bf16 %v547, %v545
    %v777 = vpack.c.bf16 %v551, %v549
    %v778 = vpack.c.bf16 %v555, %v553
    %v779 = vpack.c.bf16 %v559, %v557
    %v780 = vpack.c.bf16 %v563, %v561
    %v781 = vld [vmem:[#allocation11] sm:$0xf]
    %v782 = vld [vmem:[#allocation11 + $0x4] sm:$0xf]
    %v783 = vld [vmem:[#allocation11 + $0x8] sm:$0xf]
    %v784 = vld [vmem:[#allocation11 + $0xc] sm:$0xf]
    %v785 = vld [vmem:[#allocation11 + $0x10] sm:$0xf]
    %v786 = vld [vmem:[#allocation11 + $0x14] sm:$0xf]
    %v787 = vld [vmem:[#allocation11 + $0x18] sm:$0xf]
    %v788 = vld [vmem:[#allocation11 + $0x1c] sm:$0xf]
    %v789 = vld [vmem:[#allocation11 + $0x20] sm:$0xf]
    %v790 = vld [vmem:[#allocation11 + $0x24] sm:$0xf]
    %v791 = vld [vmem:[#allocation11 + $0x28] sm:$0xf]
    %v792 = vld [vmem:[#allocation11 + $0x2c] sm:$0xf]
    %v793 = vld [vmem:[#allocation11 + $0x30] sm:$0xf]
    %v794 = vld [vmem:[#allocation11 + $0x34] sm:$0xf]
    %v795 = vld [vmem:[#allocation11 + $0x38] sm:$0xf]
    %v796 = vld [vmem:[#allocation11 + $0x3c] sm:$0xf]
    %v813 = vunpack.c.l.b16 %v781
    %v814 = vunpack.c.l.b16 %v782
    %v815 = vunpack.c.l.b16 %v783
    %v816 = vunpack.c.l.b16 %v784
    %v817 = vunpack.c.l.b16 %v785
    %v818 = vunpack.c.l.b16 %v786
    %v819 = vunpack.c.l.b16 %v787
    %v820 = vunpack.c.l.b16 %v788
    %v821 = vunpack.c.l.b16 %v789
    %v822 = vunpack.c.l.b16 %v790
    %v823 = vunpack.c.l.b16 %v791
    %v824 = vunpack.c.l.b16 %v792
    %v825 = vunpack.c.l.b16 %v793
    %v826 = vunpack.c.l.b16 %v794
    %v827 = vunpack.c.l.b16 %v795
    %v828 = vunpack.c.l.b16 %v796
    %v829 = vpack.c.b16 %v814, %v813
    %v830 = vpack.c.b16 %v816, %v815
    %v831 = vpack.c.b16 %v818, %v817
    %v832 = vpack.c.b16 %v820, %v819
    %v833 = vpack.c.b16 %v822, %v821
    %v834 = vpack.c.b16 %v824, %v823
    %v835 = vpack.c.b16 %v826, %v825
    %v836 = vpack.c.b16 %v828, %v827
    %845 = vmatprep.subr.bf16.mxu0 0
    %846 = vmatpush1.bf16.msra.mxu0 %v829
    %847 = vmatprep.subr.bf16.mxu0 0
    %848 = vmatpush1.bf16.msra.mxu0 %v830
    %849 = vmatprep.subr.bf16.mxu0 0
    %850 = vmatpush1.bf16.msra.mxu0 %v831
    %851 = vmatprep.subr.bf16.mxu0 0
    %852 = vmatpush1.bf16.msra.mxu0 %v832
    %853 = vmatprep.subr.bf16.mxu0 0
    %854 = vmatpush1.bf16.msra.mxu0 %v833
    %855 = vmatprep.subr.bf16.mxu0 0
    %856 = vmatpush1.bf16.msra.mxu0 %v834
    %857 = vmatprep.subr.bf16.mxu0 0
    %858 = vmatpush1.bf16.msra.mxu0 %v835
    %859 = vmatprep.subr.bf16.mxu0 0
    %860 = vmatpush1.bf16.msra.mxu0 %v836
    %861 = vmatprep.subr.bf16.mxu0 0
    %862 = vmatpush1.bf16.msra.mxu0 0
    %863 = vmatprep.subr.bf16.mxu0 0
    %864 = vmatpush1.bf16.msra.mxu0 0
    %865 = vmatprep.subr.bf16.mxu0 0
    %866 = vmatpush1.bf16.msra.mxu0 0
    %867 = vmatprep.subr.bf16.mxu0 0
    %868 = vmatpush1.bf16.msra.mxu0 0
    %869 = vmatprep.subr.bf16.mxu0 0
    %870 = vmatpush1.bf16.msra.mxu0 0
    %871 = vmatprep.subr.bf16.mxu0 0
    %872 = vmatpush1.bf16.msra.mxu0 0
    %873 = vmatprep.subr.bf16.mxu0 0
    %874 = vmatpush1.bf16.msra.mxu0 0
    %875 = vmatprep.subr.bf16.mxu0 0
    %876 = vmatpush1.bf16.msra.mxu0 0
    %877 = vmatprep.mubr.bf16.mxu0 0
    %878 = vmatmul.mubr.bf16.gmra.mrb[0].mxu0 %v773
    %v879 = vpop.f32.mrb[0].mxu0
    %v880 = vadd.f32 0.0, %v879
    %v881 = vpop.f32.mrb[0].mxu0
    %v882 = vpop.f32.mrb[0].mxu0
    %v883 = vadd.f32 0.0, %v882
    %v884 = vpop.f32.mrb[0].mxu0
    %885 = vmatprep.mubr.bf16.mxu0 0
    %886 = vmatmul.mubr.bf16.gmra.mrb[0].mxu0 %v774
    %v887 = vpop.f32.mrb[0].mxu0
    %v888 = vadd.f32 0.0, %v887
    %v889 = vpop.f32.mrb[0].mxu0
    %v890 = vpop.f32.mrb[0].mxu0
    %v891 = vadd.f32 0.0, %v890
    %v892 = vpop.f32.mrb[0].mxu0
    %893 = vmatprep.mubr.bf16.mxu0 0
    %894 = vmatmul.mubr.bf16.gmra.mrb[0].mxu0 %v775
    %v895 = vpop.f32.mrb[0].mxu0
    %v896 = vadd.f32 0.0, %v895
    %v897 = vpop.f32.mrb[0].mxu0
    %v898 = vpop.f32.mrb[0].mxu0
    %v899 = vadd.f32 0.0, %v898
    %v900 = vpop.f32.mrb[0].mxu0
    %901 = vmatprep.mubr.bf16.mxu0 0
    %902 = vmatmul.mubr.bf16.gmra.mrb[0].mxu0 %v776
    %v903 = vpop.f32.mrb[0].mxu0
    %v904 = vadd.f32 0.0, %v903
    %v905 = vpop.f32.mrb[0].mxu0
    %v906 = vpop.f32.mrb[0].mxu0
    %v907 = vadd.f32 0.0, %v906
    %v908 = vpop.f32.mrb[0].mxu0
    %909 = vmatprep.mubr.bf16.mxu0 0
    %910 = vmatmul.mubr.bf16.gmra.mrb[0].mxu0 %v777
    %v911 = vpop.f32.mrb[0].mxu0
    %v912 = vadd.f32 0.0, %v911
    %v913 = vpop.f32.mrb[0].mxu0
    %v914 = vpop.f32.mrb[0].mxu0
    %v915 = vadd.f32 0.0, %v914
    %v916 = vpop.f32.mrb[0].mxu0
    %917 = vmatprep.mubr.bf16.mxu0 0
    %918 = vmatmul.mubr.bf16.gmra.mrb[0].mxu0 %v778
    %v919 = vpop.f32.mrb[0].mxu0
    %v920 = vadd.f32 0.0, %v919
    %v921 = vpop.f32.mrb[0].mxu0
    %v922 = vpop.f32.mrb[0].mxu0
    %v923 = vadd.f32 0.0, %v922
    %v924 = vpop.f32.mrb[0].mxu0
    %925 = vmatprep.mubr.bf16.mxu0 0
    %926 = vmatmul.mubr.bf16.gmra.mrb[0].mxu0 %v779
    %v927 = vpop.f32.mrb[0].mxu0
    %v928 = vadd.f32 0.0, %v927
    %v929 = vpop.f32.mrb[0].mxu0
    %v930 = vpop.f32.mrb[0].mxu0
    %v931 = vadd.f32 0.0, %v930
    %v932 = vpop.f32.mrb[0].mxu0
    %933 = vmatprep.mubr.bf16.mxu0 0
    %934 = vmatmul.mubr.bf16.gmra.mrb[0].mxu0 %v780
    %v935 = vpop.f32.mrb[0].mxu0
    %v936 = vadd.f32 0.0, %v935
    %v937 = vpop.f32.mrb[0].mxu0
    %v938 = vpop.f32.mrb[0].mxu0
    %v939 = vadd.f32 0.0, %v938
    %v940 = vpop.f32.mrb[0].mxu0
    %941 = vdwg.mxu0
    %v942 = vadd.f32 %v757, %v880
    %v943 = vadd.f32 %v758, %v883
    %v944 = vadd.f32 %v759, %v888
    %v945 = vadd.f32 %v760, %v891
    %v946 = vadd.f32 %v761, %v896
    %v947 = vadd.f32 %v762, %v899
    %v948 = vadd.f32 %v763, %v904
    %v949 = vadd.f32 %v764, %v907
    %v950 = vadd.f32 %v765, %v912
    %v951 = vadd.f32 %v766, %v915
    %v952 = vadd.f32 %v767, %v920
    %v953 = vadd.f32 %v768, %v923
    %v954 = vadd.f32 %v769, %v928
    %v955 = vadd.f32 %v770, %v931
    %v956 = vadd.f32 %v771, %v936
    %v957 = vadd.f32 %v772, %v939
    %958 = vst [vmem:[#allocation4] sm:$0xff] %v942
    %959 = vst [vmem:[#allocation4 + $0x8] sm:$0xff] %v943
    %960 = vst [vmem:[#allocation4 + $0x10] sm:$0xff] %v944
    %961 = vst [vmem:[#allocation4 + $0x18] sm:$0xff] %v945
    %962 = vst [vmem:[#allocation4 + $0x20] sm:$0xff] %v946
    %963 = vst [vmem:[#allocation4 + $0x28] sm:$0xff] %v947
    %964 = vst [vmem:[#allocation4 + $0x30] sm:$0xff] %v948
    %965 = vst [vmem:[#allocation4 + $0x38] sm:$0xff] %v949
    %966 = vst [vmem:[#allocation4 + $0x40] sm:$0xff] %v950
    %967 = vst [vmem:[#allocation4 + $0x48] sm:$0xff] %v951
    %968 = vst [vmem:[#allocation4 + $0x50] sm:$0xff] %v952
    %969 = vst [vmem:[#allocation4 + $0x58] sm:$0xff] %v953
    %970 = vst [vmem:[#allocation4 + $0x60] sm:$0xff] %v954
    %971 = vst [vmem:[#allocation4 + $0x68] sm:$0xff] %v955
    %972 = vst [vmem:[#allocation4 + $0x70] sm:$0xff] %v956
    %973 = vst [vmem:[#allocation4 + $0x78] sm:$0xff] %v957
    %974 = vst.msk [vmem:[#allocation2] sm:$0xff] %vm644, %v372
    %975 = vst.msk [vmem:[#allocation2 + $0x8] sm:$0xff] %vm644, %v373
    %976 = vst.msk [vmem:[#allocation2 + $0x10] sm:$0xff] %vm644, %v374
    %977 = vst.msk [vmem:[#allocation2 + $0x18] sm:$0xff] %vm644, %v375
    %978 = vst.msk [vmem:[#allocation2 + $0x20] sm:$0xff] %vm644, %v376
    %979 = vst.msk [vmem:[#allocation2 + $0x28] sm:$0xff] %vm644, %v377
    %980 = vst.msk [vmem:[#allocation2 + $0x30] sm:$0xff] %vm644, %v378
    %981 = vst.msk [vmem:[#allocation2 + $0x38] sm:$0xff] %vm644, %v379
    %982 = vst.msk [vmem:[#allocation2 + $0x40] sm:$0xff] %vm644, %v380
    %983 = vst.msk [vmem:[#allocation2 + $0x48] sm:$0xff] %vm644, %v381
    %984 = vst.msk [vmem:[#allocation2 + $0x50] sm:$0xff] %vm644, %v382
    %985 = vst.msk [vmem:[#allocation2 + $0x58] sm:$0xff] %vm644, %v383
    %986 = vst.msk [vmem:[#allocation2 + $0x60] sm:$0xff] %vm644, %v384
    %987 = vst.msk [vmem:[#allocation2 + $0x68] sm:$0xff] %vm644, %v385
    %988 = vst.msk [vmem:[#allocation2 + $0x70] sm:$0xff] %vm644, %v386
    %989 = vst.msk [vmem:[#allocation2 + $0x78] sm:$0xff] %vm644, %v387
    // Predicated region
    $region38: #{tpu_custom_call.1} parent=1 // pred_check
      %p990 = pneg %p72
    $region39: #{tpu_custom_call.1} parent=1 // pred_check_branch
      %992 = sbr.rel (%p990) target = $region41
    $region40: #{tpu_custom_call.1} parent=1 // pred_region
      %v993 = vld [vmem:[#allocation4] sm:$0xff]
      %v994 = vld [vmem:[#allocation4 + $0x8] sm:$0xff]
      %v995 = vld [vmem:[#allocation4 + $0x10] sm:$0xff]
      %v996 = vld [vmem:[#allocation4 + $0x18] sm:$0xff]
      %v997 = vld [vmem:[#allocation4 + $0x20] sm:$0xff]
      %v998 = vld [vmem:[#allocation4 + $0x28] sm:$0xff]
      %v999 = vld [vmem:[#allocation4 + $0x30] sm:$0xff]
      %v1000 = vld [vmem:[#allocation4 + $0x38] sm:$0xff]
      %v1001 = vld [vmem:[#allocation4 + $0x40] sm:$0xff]
      %v1002 = vld [vmem:[#allocation4 + $0x48] sm:$0xff]
      %v1003 = vld [vmem:[#allocation4 + $0x50] sm:$0xff]
      %v1004 = vld [vmem:[#allocation4 + $0x58] sm:$0xff]
      %v1005 = vld [vmem:[#allocation4 + $0x60] sm:$0xff]
      %v1006 = vld [vmem:[#allocation4 + $0x68] sm:$0xff]
      %v1007 = vld [vmem:[#allocation4 + $0x70] sm:$0xff]
      %v1008 = vld [vmem:[#allocation4 + $0x78] sm:$0xff]
      %v1009 = vld [vmem:[#allocation3] sm:$0xff]
      %v1010 = vld [vmem:[#allocation3 + $0x8] sm:$0xff]
      %v1011 = vld [vmem:[#allocation3 + $0x10] sm:$0xff]
      %v1012 = vld [vmem:[#allocation3 + $0x18] sm:$0xff]
      %v1013 = vld [vmem:[#allocation3 + $0x20] sm:$0xff]
      %v1014 = vld [vmem:[#allocation3 + $0x28] sm:$0xff]
      %v1015 = vld [vmem:[#allocation3 + $0x30] sm:$0xff]
      %v1016 = vld [vmem:[#allocation3 + $0x38] sm:$0xff]
      %v1017 = vld [vmem:[#allocation3 + $0x40] sm:$0xff]
      %v1018 = vld [vmem:[#allocation3 + $0x48] sm:$0xff]
      %v1019 = vld [vmem:[#allocation3 + $0x50] sm:$0xff]
      %v1020 = vld [vmem:[#allocation3 + $0x58] sm:$0xff]
      %v1021 = vld [vmem:[#allocation3 + $0x60] sm:$0xff]
      %v1022 = vld [vmem:[#allocation3 + $0x68] sm:$0xff]
      %v1023 = vld [vmem:[#allocation3 + $0x70] sm:$0xff]
      %v1024 = vld [vmem:[#allocation3 + $0x78] sm:$0xff]
      %v1025 = vrcp.pop %v1009
      %v1026 = vrcp.pop %v1010
      %v1027 = vrcp.pop %v1011
      %v1028 = vrcp.pop %v1012
      %v1029 = vrcp.pop %v1013
      %v1030 = vrcp.pop %v1014
      %v1031 = vrcp.pop %v1015
      %v1032 = vrcp.pop %v1016
      %v1033 = vrcp.pop %v1017
      %v1034 = vrcp.pop %v1018
      %v1035 = vrcp.pop %v1019
      %v1036 = vrcp.pop %v1020
      %v1037 = vrcp.pop %v1021
      %v1038 = vrcp.pop %v1022
      %v1039 = vrcp.pop %v1023
      %v1040 = vrcp.pop %v1024
      %1042 = vset.pattern.permute.xlu0 0
      %1043 = vperm.xlu0 %1042, %v1025
      %v1044 = vpop.permute.xlu0 %1043
      %1047 = vset.pattern.permute.xlu0 0
      %1048 = vperm.xlu0 %1047, %v1026
      %v1049 = vpop.permute.xlu0 %1048
      %1052 = vset.pattern.permute.xlu0 0
      %1053 = vperm.xlu0 %1052, %v1027
      %v1054 = vpop.permute.xlu0 %1053
      %1057 = vset.pattern.permute.xlu0 0
      %1058 = vperm.xlu0 %1057, %v1028
      %v1059 = vpop.permute.xlu0 %1058
      %1062 = vset.pattern.permute.xlu0 0
      %1063 = vperm.xlu0 %1062, %v1029
      %v1064 = vpop.permute.xlu0 %1063
      %1067 = vset.pattern.permute.xlu0 0
      %1068 = vperm.xlu0 %1067, %v1030
      %v1069 = vpop.permute.xlu0 %1068
      %1072 = vset.pattern.permute.xlu0 0
      %1073 = vperm.xlu0 %1072, %v1031
      %v1074 = vpop.permute.xlu0 %1073
      %1077 = vset.pattern.permute.xlu0 0
      %1078 = vperm.xlu0 %1077, %v1032
      %v1079 = vpop.permute.xlu0 %1078
      %1082 = vset.pattern.permute.xlu0 0
      %1083 = vperm.xlu0 %1082, %v1033
      %v1084 = vpop.permute.xlu0 %1083
      %1087 = vset.pattern.permute.xlu0 0
      %1088 = vperm.xlu0 %1087, %v1034
      %v1089 = vpop.permute.xlu0 %1088
      %1092 = vset.pattern.permute.xlu0 0
      %1093 = vperm.xlu0 %1092, %v1035
      %v1094 = vpop.permute.xlu0 %1093
      %1097 = vset.pattern.permute.xlu0 0
      %1098 = vperm.xlu0 %1097, %v1036
      %v1099 = vpop.permute.xlu0 %1098
      %1102 = vset.pattern.permute.xlu0 0
      %1103 = vperm.xlu0 %1102, %v1037
      %v1104 = vpop.permute.xlu0 %1103
      %1107 = vset.pattern.permute.xlu0 0
      %1108 = vperm.xlu0 %1107, %v1038
      %v1109 = vpop.permute.xlu0 %1108
      %1112 = vset.pattern.permute.xlu0 0
      %1113 = vperm.xlu0 %1112, %v1039
      %v1114 = vpop.permute.xlu0 %1113
      %1117 = vset.pattern.permute.xlu0 0
      %1118 = vperm.xlu0 %1117, %v1040
      %v1119 = vpop.permute.xlu0 %1118
      %v1121 = vmul.f32 %v993, %v1044
      %v1122 = vmul.f32 %v994, %v1049
      %v1123 = vmul.f32 %v995, %v1054
      %v1124 = vmul.f32 %v996, %v1059
      %v1125 = vmul.f32 %v997, %v1064
      %v1126 = vmul.f32 %v998, %v1069
      %v1127 = vmul.f32 %v999, %v1074
      %v1128 = vmul.f32 %v1000, %v1079
      %v1129 = vmul.f32 %v1001, %v1084
      %v1130 = vmul.f32 %v1002, %v1089
      %v1131 = vmul.f32 %v1003, %v1094
      %v1132 = vmul.f32 %v1004, %v1099
      %v1133 = vmul.f32 %v1005, %v1104
      %v1134 = vmul.f32 %v1006, %v1109
      %v1135 = vmul.f32 %v1007, %v1114
      %v1136 = vmul.f32 %v1008, %v1119
      %1137 = vst [vmem:[#allocation13] sm:$0xff] %v1121
      %1138 = vst [vmem:[#allocation13 + $0x8] sm:$0xff] %v1122
      %1139 = vst [vmem:[#allocation13 + $0x10] sm:$0xff] %v1123
      %1140 = vst [vmem:[#allocation13 + $0x18] sm:$0xff] %v1124
      %1141 = vst [vmem:[#allocation13 + $0x20] sm:$0xff] %v1125
      %1142 = vst [vmem:[#allocation13 + $0x28] sm:$0xff] %v1126
      %1143 = vst [vmem:[#allocation13 + $0x30] sm:$0xff] %v1127
      %1144 = vst [vmem:[#allocation13 + $0x38] sm:$0xff] %v1128
      %1145 = vst [vmem:[#allocation13 + $0x40] sm:$0xff] %v1129
      %1146 = vst [vmem:[#allocation13 + $0x48] sm:$0xff] %v1130
      %1147 = vst [vmem:[#allocation13 + $0x50] sm:$0xff] %v1131
      %1148 = vst [vmem:[#allocation13 + $0x58] sm:$0xff] %v1132
      %1149 = vst [vmem:[#allocation13 + $0x60] sm:$0xff] %v1133
      %1150 = vst [vmem:[#allocation13 + $0x68] sm:$0xff] %v1134
      %1151 = vst [vmem:[#allocation13 + $0x70] sm:$0xff] %v1135
      %1152 = vst [vmem:[#allocation13 + $0x78] sm:$0xff] %v1136
    $region41: #{tpu_custom_call.1} parent=1 // pred_fallthru
      _
    // Predicated region
    $region42: #{tpu_custom_call.1} parent=1 // pred_check
      _
    $region43: #{tpu_custom_call.1} parent=1 // pred_check_branch
      %1154 = sbr.rel (0) target = $region45
    $region44: #{tpu_custom_call.1} parent=1 // pred_region
      %s1156 = ssub.s32 2048, 2048
      %1157 = vsyncadd [#allocation7], %s1156
      %s1158 = sshll.u32 [#allocation13], 4
      %s1159 = int_to_ptr.vmem [resolvable:$true] %s1158
      %1164 = dma.vmem_to_hbm [thread:$0]  %s1159, 2048, %s4, [#allocation7], 128, 128, 8
    $region45: #{tpu_custom_call.1} parent=1 // pred_fallthru
      _
    // Predicated region
    $region46: #{tpu_custom_call.1} parent=1 // pred_check
      _
    $region47: #{tpu_custom_call.1} parent=1 // pred_check_branch
      %1166 = sbr.rel (0) target = $region49
    $region48: #{tpu_custom_call.1} parent=1 // pred_region
      %1167 = dma.done [#allocation7], 2048
    $region49: #{tpu_custom_call.1} parent=1 // pred_fallthru
      _
    %1168 = vsyncpa [#allocation6], 1
    %1169 = vsyncpa [#allocation9], 1
    %1170 = vsyncpa [#allocation12], 1
    %1171 = vsyncpa [#allocation7], 1

</llo_original>
